<compile_context>
chip_gen: v6e
topology: v6e:2x2x1
jax: 0.10.0
libtpu: 0.0.40
codegen_flags: <defaults>
</compile_context>

<pallas_src>
import jax
import jax.numpy as jnp
from jax import lax
from jax.experimental import pallas as pl
from jax.experimental.pallas import tpu as pltpu


def _make_bce_kernel(TILE_B, F, rem, need_mask):
    """Kernel closure over static tiling / true-shape parameters.

    rem = number of valid rows in the last tile (== TILE_B when not ragged).
    """

    def write_parts(out_ref, loss, corr):
        # Partial sums over sublane groups of 8: pure vreg VPU adds, no
        # serializing scalar accumulator and no cross-lane (XLU) reduce.
        out_ref[0, 0] = loss.reshape(TILE_B // 8, 8, F).sum(axis=0)
        out_ref[0, 1] = corr.reshape(TILE_B // 8, 8, F).sum(axis=0)

    def kernel(x_ref, t_ref, out_ref):
        x = x_ref[...].astype(jnp.float32)
        t = t_ref[...].astype(jnp.float32)

        # Numerically-stable BCE-with-logits, identical to
        #   -t*log(sigmoid(x)) - (1-t)*log(1-sigmoid(x))
        # and finite for all x (log1p keeps the tail for |x| > ~17).
        loss = jnp.maximum(x, 0.0) - x * t + jnp.log1p(jnp.exp(-jnp.abs(x)))

        # sigmoid(x) >= 0.5  <=>  x >= 0: no sigmoid needed for the prediction.
        pred = (x >= 0.0).astype(jnp.float32)
        corr = (pred == t).astype(jnp.float32)

        if need_mask:
            last = pl.num_programs(0) - 1

            @pl.when(pl.program_id(0) == last)
            def _():
                # Ragged last tile: rows >= rem are out-of-bounds reads with
                # unspecified values; select (not multiply) them away.
                rows = lax.broadcasted_iota(jnp.int32, (TILE_B, F), 0)
                valid = rows < rem
                write_parts(out_ref,
                            jnp.where(valid, loss, 0.0),
                            jnp.where(valid, corr, 0.0))

            @pl.when(pl.program_id(0) != last)
            def _():
                write_parts(out_ref, loss, corr)
        else:
            write_parts(out_ref, loss, corr)

    return kernel


def custom_bce_loss(inputs, target, *, tile_rows=None):
    """Returns (loss, accuracy) with the same semantics as CustomBCELoss.forward.

    Accepts f32 or bf16 logits / {0,1} targets of identical shape (bf16 halves
    HBM traffic; math is always f32 in-kernel).
    """
    assert inputs.shape == target.shape
    B = int(inputs.shape[0])          # len(target) in the PyTorch module
    n_elems = int(inputs.size)        # mean is over all elements
    F = max(1, n_elems // B)

    x2 = inputs.reshape(B, F)
    t2 = target.reshape(B, F)

    # Batch tile: multiple of 8 sublanes, targeting ~4 MiB per input block in
    # f32 terms (double-buffered x 2 inputs = 16 MiB, under the 32 MiB limit
    # set below and under v7x's 64 MiB physical VMEM).
    if tile_rows is None:
        tile_rows = max(8, (((4 << 20) // (F * 4)) // 8) * 8)
    tile_rows = max(8, (int(tile_rows) // 8) * 8)

    if B >= 8:
        # Keep the block inside the array's row extent; the last grid step may
        # still be ragged (partially out of bounds) and is masked in-kernel.
        TILE_B = min(tile_rows, (B // 8) * 8)
        b_rows = B
    else:
        # Degenerate tiny batch: pad < 8 rows (negligible), mask with true B.
        TILE_B = 8
        b_rows = 8
        x2 = jnp.pad(x2, ((0, 8 - B), (0, 0)))
        t2 = jnp.pad(t2, ((0, 8 - B), (0, 0)))

    num_tiles = pl.cdiv(b_rows, TILE_B)
    rem = B - (num_tiles - 1) * TILE_B        # valid rows in the last tile
    need_mask = rem != TILE_B

    kernel = _make_bce_kernel(TILE_B, F, rem, need_mask)

    out_bytes = num_tiles * 2 * 8 * F * 4
    parts = pl.pallas_call(
        kernel,
        grid=(num_tiles,),
        in_specs=[
            pl.BlockSpec((TILE_B, F), lambda i: (i, 0)),
            pl.BlockSpec((TILE_B, F), lambda i: (i, 0)),
        ],
        out_specs=pl.BlockSpec((1, 2, 8, F), lambda i: (i, 0, 0, 0)),
        out_shape=jax.ShapeDtypeStruct((num_tiles, 2, 8, F), jnp.float32),
        compiler_params=pltpu.CompilerParams(
            dimension_semantics=("parallel",),
            vmem_limit_bytes=32 * 1024 * 1024,
        ),
        cost_estimate=pl.CostEstimate(
            flops=12 * n_elems,
            transcendentals=2 * n_elems,
            bytes_accessed=(x2.size * x2.dtype.itemsize
                            + t2.size * t2.dtype.itemsize
                            + out_bytes),
        ),
    )(x2, t2)

    # Tiny final reductions + divides in XLA (negligible vs the main pass).
    loss = jnp.sum(parts[:, 0]) / jnp.float32(n_elems)
    # NOTE: matches the PyTorch module exactly — `correct` counts ALL elements
    # but the divisor is len(target) == batch, so accuracy can exceed 1.0 for
    # multi-feature targets. Intentional.
    accuracy = jnp.sum(parts[:, 1]) / jnp.float32(B)
    return loss, accuracy


def _ref(x, t):
    p = jax.nn.sigmoid(x)
    loss = jnp.mean(-t * jnp.log(p) - (1.0 - t) * jnp.log(1.0 - p))
    acc = jnp.sum(((p >= 0.5).astype(jnp.float32) == t)) / x.shape[0]
    return loss, acc


if __name__ == "__main__":
    key = jax.random.PRNGKey(0)
    kx, kt = jax.random.split(key)

    # 1) Small aligned shape consistent with the module: (batch=8, feat=128).
    x = jax.random.normal(kx, (8, 128), dtype=jnp.float32)
    t = (jax.random.uniform(kt, (8, 128)) > 0.5).astype(jnp.float32)
    loss, acc = custom_bce_loss(x, t)
    jax.block_until_ready((loss, acc))
    rl, ra = _ref(x, t)
    assert jnp.allclose(loss, rl, rtol=1e-5, atol=1e-5), (loss, rl)
    assert jnp.allclose(acc, ra, rtol=1e-5, atol=1e-5), (acc, ra)

    # 2) Ragged tiny batch (B < 8) + non-128 feature dim: exercises the
    #    full-dim feature block and the masked last tile.
    x2 = jax.random.normal(kx, (6, 100), dtype=jnp.float32)
    t2 = (jax.random.uniform(kt, (6, 100)) > 0.5).astype(jnp.float32)
    loss2, acc2 = custom_bce_loss(x2, t2)
    jax.block_until_ready((loss2, acc2))
    rl2, ra2 = _ref(x2, t2)
    assert jnp.allclose(loss2, rl2, rtol=1e-5, atol=1e-5), (loss2, rl2)
    assert jnp.allclose(acc2, ra2, rtol=1e-5, atol=1e-5), (acc2, ra2)

    # 3) Multi-tile ragged grid (forced small tile): 20 rows, TILE_B=16 ->
    #    2 grid steps, last step has 4 valid rows (masked in-kernel, no pad).
    x3 = jax.random.normal(kt, (20, 100), dtype=jnp.float32)
    t3 = (jax.random.uniform(kx, (20, 100)) > 0.5).astype(jnp.float32)
    loss3, acc3 = custom_bce_loss(x3, t3, tile_rows=16)
    jax.block_until_ready((loss3, acc3))
    rl3, ra3 = _ref(x3, t3)
    assert jnp.allclose(loss3, rl3, rtol=1e-5, atol=1e-5), (loss3, rl3)
    assert jnp.allclose(acc3, ra3, rtol=1e-5, atol=1e-5), (acc3, ra3)

    print("KERNEL_OK")
</pallas_src>

<mosaic_0001>
module attributes {stable_mosaic.version = 11 : i64} {
  func.func @kernel(%arg0: i32, %arg1: memref<8x128xf32, #tpu.memory_space<vmem>>, %arg2: memref<8x128xf32, #tpu.memory_space<vmem>>, %arg3: memref<1x2x8x128xf32, #tpu.memory_space<vmem>>) attributes {dimension_semantics = [#tpu.dimension_semantics<parallel>], iteration_bounds = array<i64: 1>, scalar_prefetch = 0 : i64, scratch_operands = 0 : i64, tpu.core_type = #tpu.core_type<tc>, window_params = [{transform_indices = @transform_0, window_bounds = array<i64: 8, 128>}, {transform_indices = @transform_1, window_bounds = array<i64: 8, 128>}, {transform_indices = @transform_2, window_bounds = array<i64: 1, 2, 8, 128>}]} {
    %c0 = arith.constant 0 : index
    %c0_0 = arith.constant 0 : index
    %0 = vector.load %arg1[%c0, %c0_0] : memref<8x128xf32, #tpu.memory_space<vmem>>, vector<8x128xf32>
    %c0_1 = arith.constant 0 : index
    %c0_2 = arith.constant 0 : index
    %1 = vector.load %arg2[%c0_1, %c0_2] : memref<8x128xf32, #tpu.memory_space<vmem>>, vector<8x128xf32>
    %cst = arith.constant 0.000000e+00 : f32
    %2 = vector.broadcast %cst : f32 to vector<8x128xf32>
    %3 = arith.maximumf %0, %2 : vector<8x128xf32>
    %4 = arith.mulf %0, %1 : vector<8x128xf32>
    %5 = arith.subf %3, %4 : vector<8x128xf32>
    %6 = math.absf %0 : vector<8x128xf32>
    %cst_3 = arith.constant 0.000000e+00 : f32
    %7 = vector.broadcast %cst_3 : f32 to vector<8x128xf32>
    %8 = arith.subf %7, %6 : vector<8x128xf32>
    %9 = math.exp %8 : vector<8x128xf32>
    %10 = math.log1p %9 : vector<8x128xf32>
    %11 = arith.addf %5, %10 : vector<8x128xf32>
    %cst_4 = arith.constant 0.000000e+00 : f32
    %12 = vector.broadcast %cst_4 : f32 to vector<8x128xf32>
    %13 = arith.cmpf oge, %0, %12 : vector<8x128xf32>
    %14 = arith.extui %13 : vector<8x128xi1> to vector<8x128xi32>
    %15 = arith.sitofp %14 : vector<8x128xi32> to vector<8x128xf32>
    %16 = arith.cmpf oeq, %15, %1 : vector<8x128xf32>
    %17 = arith.extui %16 : vector<8x128xi1> to vector<8x128xi32>
    %18 = arith.sitofp %17 : vector<8x128xi32> to vector<8x128xf32>
    %19 = vector.shape_cast %11 : vector<8x128xf32> to vector<1x8x128xf32>
    %cst_5 = arith.constant dense<0.000000e+00> : vector<8x128xf32>
    %20 = vector.multi_reduction <add>, %19, %cst_5 [0] : vector<1x8x128xf32> to vector<8x128xf32>
    %c0_6 = arith.constant 0 : index
    %c0_7 = arith.constant 0 : index
    %c0_8 = arith.constant 0 : index
    %c0_9 = arith.constant 0 : index
    %21 = vector.load %arg3[%c0_6, %c0_7, %c0_8, %c0_9] : memref<1x2x8x128xf32, #tpu.memory_space<vmem>>, vector<1x1x8x128xf32>
    %22 = vector.shape_cast %21 : vector<1x1x8x128xf32> to vector<8x128xf32>
    %23 = vector.shape_cast %20 : vector<8x128xf32> to vector<1x1x8x128xf32>
    tpu.vector_store %arg3[%c0_6, %c0_7, %c0_8, %c0_9], %23 {strides = array<i32>} : memref<1x2x8x128xf32, #tpu.memory_space<vmem>>, vector<1x1x8x128xf32>,
    %24 = vector.shape_cast %18 : vector<8x128xf32> to vector<1x8x128xf32>
    %cst_10 = arith.constant dense<0.000000e+00> : vector<8x128xf32>
    %25 = vector.multi_reduction <add>, %24, %cst_10 [0] : vector<1x8x128xf32> to vector<8x128xf32>
    %c0_11 = arith.constant 0 : index
    %c1 = arith.constant 1 : index
    %c0_12 = arith.constant 0 : index
    %c0_13 = arith.constant 0 : index
    %26 = vector.load %arg3[%c0_11, %c1, %c0_12, %c0_13] : memref<1x2x8x128xf32, #tpu.memory_space<vmem>>, vector<1x1x8x128xf32>
    %27 = vector.shape_cast %26 : vector<1x1x8x128xf32> to vector<8x128xf32>
    %28 = vector.shape_cast %25 : vector<8x128xf32> to vector<1x1x8x128xf32>
    tpu.vector_store %arg3[%c0_11, %c1, %c0_12, %c0_13], %28 {strides = array<i32>} : memref<1x2x8x128xf32, #tpu.memory_space<vmem>>, vector<1x1x8x128xf32>,
    return
  }
  func.func @transform_0(%arg0: i32) -> (i32, i32) {
    %c0_i32 = arith.constant 0 : i32
    %c0_i32_0 = arith.constant 0 : i32
    return %arg0, %c0_i32 : i32, i32
  }
  func.func @transform_1(%arg0: i32) -> (i32, i32) {
    %c0_i32 = arith.constant 0 : i32
    %c0_i32_0 = arith.constant 0 : i32
    return %arg0, %c0_i32 : i32, i32
  }
  func.func @transform_2(%arg0: i32) -> (i32, i32, i32, i32) {
    %c0_i32 = arith.constant 0 : i32
    %c0_i32_0 = arith.constant 0 : i32
    %c0_i32_1 = arith.constant 0 : i32
    %c0_i32_2 = arith.constant 0 : i32
    return %arg0, %c0_i32, %c0_i32_0, %c0_i32_1 : i32, i32, i32, i32
  }
}

</mosaic_0001>

<llo_original>
// kernel: tpu_custom_call.1
$region0: #{tpu_custom_call.1}
  #allocation0 [shape = 'u32[]', space=smem, size = 0x4, offset = 0x4, fixed_abs, tag = 'smem constant byte address 0x4 - core index']
  #allocation1 [shape = 'u32[144,128]{1,0:T(1,128)}', space=vmem, size = 0x12000, scoped, tag = 'internal scratch']
  %s0 = inlined_call_operand.hbm [shape: f32[8,128], index: 0, kind: input, shape index: {}]
  %s1 = inlined_call_operand.hbm [shape: f32[8,128], index: 1, kind: input, shape index: {}]
  %s2 = inlined_call_operand.hbm [shape: f32[1,2,8,128], index: 2, kind: output, shape index: {}]
  %s3 = sld [smem:[#allocation0]]
  $region26: #{tpu_custom_call.1} parent=0
    _
  %s5 = ssub.s32 1, %s3
  %s6 = scalar_select 0, %s5, %s3
  $region1: #{tpu_custom_call.1} parent=0
    #allocation2 [shape = 'u8[4096]{0}', space=vmem, size = 0x1000, scoped, tag = 'input window, operand 0, single buffered']
    #allocation3 [shape = 's32[1]{0}', space=sflag, size = 0x4, scoped, tag = 'scoped memory for tpu_custom_call.1']
    #allocation4 [shape = 's32[1]{0}', space=sflag, size = 0x4, scoped, tag = 'scoped memory for tpu_custom_call.1']
    #allocation5 [shape = 'u8[4096]{0}', space=vmem, size = 0x1000, scoped, tag = 'input window, operand 1, single buffered']
    #allocation6 [shape = 's32[1]{0}', space=sflag, size = 0x4, scoped, tag = 'scoped memory for tpu_custom_call.1']
    #allocation7 [shape = 'u8[8192]{0}', space=vmem, size = 0x2000, scoped, tag = 'output window, operand 0, single buffered']
    %7 = vsyncpa [#allocation3], 0
    %8 = vsyncpa [#allocation6], 0
    %9 = vsyncpa [#allocation4], 0
    // Predicated region
    $region2: #{tpu_custom_call.1} parent=1 // pred_check
      _
    $region3: #{tpu_custom_call.1} parent=1 // pred_check_branch
      %11 = sbr.rel (0) target = $region5
    $region4: #{tpu_custom_call.1} parent=1 // pred_region
      %s13 = ssub.s32 128, 128
      %14 = vsyncadd [#allocation3], %s13
      %s16 = sshll.u32 [#allocation2], 4
      %s17 = int_to_ptr.vmem [resolvable:$true] %s16
      %19 = dma.hbm_to_vmem [thread:$0]  %s0, 128, %s17, [#allocation3]
    $region5: #{tpu_custom_call.1} parent=1 // pred_fallthru
      _
    // Predicated region
    $region6: #{tpu_custom_call.1} parent=1 // pred_check
      _
    $region7: #{tpu_custom_call.1} parent=1 // pred_check_branch
      %21 = sbr.rel (0) target = $region9
    $region8: #{tpu_custom_call.1} parent=1 // pred_region
      %s23 = ssub.s32 128, 128
      %24 = vsyncadd [#allocation6], %s23
      %s26 = sshll.u32 [#allocation5], 4
      %s27 = int_to_ptr.vmem [resolvable:$true] %s26
      %29 = dma.hbm_to_vmem [thread:$0]  %s1, 128, %s27, [#allocation6]
    $region9: #{tpu_custom_call.1} parent=1 // pred_fallthru
      _
    // Predicated region
    $region10: #{tpu_custom_call.1} parent=1 // pred_check
      _
    $region11: #{tpu_custom_call.1} parent=1 // pred_check_branch
      %31 = sbr.rel (0) target = $region13
    $region12: #{tpu_custom_call.1} parent=1 // pred_region
      %32 = dma.done [#allocation3], 128
    $region13: #{tpu_custom_call.1} parent=1 // pred_fallthru
      _
    // Predicated region
    $region14: #{tpu_custom_call.1} parent=1 // pred_check
      _
    $region15: #{tpu_custom_call.1} parent=1 // pred_check_branch
      %34 = sbr.rel (0) target = $region17
    $region16: #{tpu_custom_call.1} parent=1 // pred_region
      %35 = dma.done [#allocation6], 128
    $region17: #{tpu_custom_call.1} parent=1 // pred_fallthru
      _
    %v36 = vld [vmem:[#allocation2] sm:$0xff]
    %v37 = vld [vmem:[#allocation5] sm:$0xff]
    %v38 = vmax.f32 %v36, 0.0
    %v39 = vmul.f32 %v36, %v37
    %v40 = vsub.f32 %v38, %v39
    %v41 = vand.u32 2147483647, %v36
    %v42 = vsub.f32 0.0, %v41
    %v43 = vmul.f32 %v42, 1.442695
    %v44 = vpow.pop %v43
    %v45 = vadd.f32 %v44, 1.0
    %v46 = vlog2.pop %v45
    %v47 = vmul.f32 %v46, 0.6931472
    %v48 = vmul.f32 -0.5, %v44
    %v49 = vadd.f32 %v48, 1.0
    %v50 = vmul.f32 %v49, %v44
    %v51 = vand.u32 2147483647, %v44
    %vm52 = vcmp.lt.f32.partialorder %v51, 0.0004427343
    %v53 = vsel %vm52, %v50, %v47
    %v54 = vadd.f32 %v40, %v53
    %vm55 = vcmp.ge.f32.partialorder %v36, 0.0
    %v56 = vsel %vm55, 1, 0
    %v57 = vcvt.s32.f32 %v56
    %vm58 = vcmp.eq.f32.partialorder %v57, %v37
    %v59 = vsel %vm58, 1, 0
    %v60 = vcvt.s32.f32 %v59
    %v61 = vadd.f32 %v54, 0.0
    %62 = vst [vmem:[#allocation7] sm:$0xff] %v61
    %v63 = vadd.f32 %v60, 0.0
    %s64 = scalar_lea.vmem [#allocation7], 8
    %65 = vst [vmem:[%s64] sm:$0xff] %v63
    // Predicated region
    $region18: #{tpu_custom_call.1} parent=1 // pred_check
      _
    $region19: #{tpu_custom_call.1} parent=1 // pred_check_branch
      %67 = sbr.rel (0) target = $region21
    $region20: #{tpu_custom_call.1} parent=1 // pred_region
      %s69 = ssub.s32 256, 256
      %70 = vsyncadd [#allocation4], %s69
      %s71 = sshll.u32 [#allocation7], 4
      %s72 = int_to_ptr.vmem [resolvable:$true] %s71
      %77 = dma.vmem_to_hbm [thread:$0]  %s72, 256, %s2, [#allocation4], 128, 128, 8
    $region21: #{tpu_custom_call.1} parent=1 // pred_fallthru
      _
    // Predicated region
    $region22: #{tpu_custom_call.1} parent=1 // pred_check
      _
    $region23: #{tpu_custom_call.1} parent=1 // pred_check_branch
      %79 = sbr.rel (0) target = $region25
    $region24: #{tpu_custom_call.1} parent=1 // pred_region
      %80 = dma.done [#allocation4], 256
    $region25: #{tpu_custom_call.1} parent=1 // pred_fallthru
      _
    %81 = vsyncpa [#allocation3], 1
    %82 = vsyncpa [#allocation6], 1
    %83 = vsyncpa [#allocation4], 1

</llo_original>
